<compile_context>
chip_gen: v7x
topology: tpu7x:2x2x1
jax: 0.10.0
libtpu: 0.0.40
codegen_flags: <defaults>
</compile_context>

<pallas_src>
import numpy as np
import jax
import jax.numpy as jnp
from jax import lax
from jax.experimental import pallas as pl
from jax.experimental.pallas import tpu as pltpu

IN_CHANNELS = 32
HID = 16
OUT_CHANNELS = 8
K = 3
LAMBDA1 = 3.0
LAMBDA2 = 3.0


def _vmem_limit_bytes():
    """Generation-aware VMEM budget: half of physical capacity.

    v5e/v6e (128 MiB) -> 64 MiB, v7x (64 MiB) -> 32 MiB; conservative fallback if
    the trace-time query is unavailable.
    """
    try:
        cap = int(pltpu.get_tpu_info().vmem_capacity_bytes)
    except Exception:
        cap = 64 * 1024 * 1024
    return max(cap // 2, 16 * 1024 * 1024)


# ----------------------------- Pallas kernel ------------------------------ #

def _elastic_gnn_kernel(x_ref, w1_ref, b1_ref, w2_ref, b2_ref, inc_ref, o_ref):
    """Fused MLP + elastic message passing (ElasticConv.emp_forward, L21=True)."""
    # --- MLP: Dropout -> Linear -> ReLU -> Dropout -> Linear (dropout == identity) ---
    # TODO(synk): dropout is applied as eval-mode identity (no RNG masking in-kernel);
    # training semantics would need pltpu.prng_seed / prng_random_bits masks.
    h = jnp.dot(x_ref[...], w1_ref[...], preferred_element_type=jnp.float32) + b1_ref[...]
    h = jnp.maximum(h, 0.0)                                   # relu
    hh = jnp.dot(h, w2_ref[...], preferred_element_type=jnp.float32) + b2_ref[...]

    # --- Elastic message passing, lambda1 = lambda2 = 3, L21 projection ---
    gamma = 1.0 / (1.0 + LAMBDA2)
    beta = 1.0 / (2.0 * gamma)
    one_minus_gamma = 1.0 - gamma

    inc = inc_ref[...]                                        # (E, N) bf16 normalized incident
    ghh = gamma * hh                                          # hoisted out of the K loop

    x = hh
    # bf16 MXU operands, f32 accumulation.
    z = jnp.dot(inc, hh.astype(jnp.bfloat16), preferred_element_type=jnp.float32)  # (E, F)
    for _ in range(K):
        y = ghh + one_minus_gamma * x
        # inc^T @ z without materializing inc.T: contract the edge axis directly on the MXU.
        x = y - gamma * lax.dot_general(
            inc, z.astype(jnp.bfloat16),
            dimension_numbers=(((0,), (0,)), ((), ())),
            preferred_element_type=jnp.float32)
        z_bar = z + beta * jnp.dot(inc, x.astype(jnp.bfloat16),
                                   preferred_element_type=jnp.float32)
        # L21: row-wise projection onto the l2 ball of radius lambda1 (rsqrt / EUP form).
        sumsq = jnp.sum(z_bar * z_bar, axis=1, keepdims=True)
        # rsqrt(0) = inf -> scale clamps to 1, and z_bar is 0 there, so result matches
        # the reference's explicit zero-norm branch exactly.
        scale = jnp.minimum(1.0, LAMBDA1 * lax.rsqrt(sumsq))
        z = scale * z_bar
    o_ref[...] = x.astype(o_ref.dtype)


# ------------------------------- wrapper ----------------------------------- #

_VMEM_SPEC = pl.BlockSpec(memory_space=pltpu.MemorySpace.VMEM)


@jax.jit
def elastic_gnn_forward(x, inc_bf16, params):
    """x: (N, IN_CHANNELS) f32, inc_bf16: (E, N) bf16 normalized incident matrix."""
    w1, b1, w2, b2 = params
    n = x.shape[0]
    return pl.pallas_call(
        _elastic_gnn_kernel,
        out_shape=jax.ShapeDtypeStruct((n, OUT_CHANNELS), jnp.float32),
        in_specs=[_VMEM_SPEC] * 6,
        out_specs=_VMEM_SPEC,
        compiler_params=pltpu.CompilerParams(
            vmem_limit_bytes=_vmem_limit_bytes(),
        ),
    )(x, w1, b1, w2, b2, inc_bf16)


# --------------------------- graph preprocessing --------------------------- #

def build_normalized_incident(edge_index, num_nodes):
    """Dense equivalent of greatx get_inc + inc_norm (one-time glue, not hot path)."""
    # TODO(synk): for large graphs replace this dense (E, N) incident matrix with a
    # scalar-prefetch gather / segment-sum formulation (O(E*F) work instead of O(E*N*F)).
    row, col = edge_index[0], edge_index[1]
    mask = row >= col                       # keep one direction per undirected edge
    row_m, col_m = row[mask], col[mask]
    e = row_m.shape[0]
    inc = np.zeros((e, num_nodes), np.float32)
    inc[np.arange(e), row_m] = 1.0
    inc[np.arange(e), col_m] = -1.0
    # degree from edge_index with self-loops added, column-wise D^{-1/2} scaling
    deg = np.bincount(row, minlength=num_nodes).astype(np.float32) + 1.0
    inc = inc * (deg ** -0.5)[None, :]
    return inc                              # numpy f32


# ------------------------------ pure-JAX ref -------------------------------- #

def _reference(x, inc, params):
    w1, b1, w2, b2 = params
    h = jnp.maximum(x @ w1 + b1, 0.0) @ w2 + b2
    gamma = 1.0 / (1.0 + LAMBDA2)
    beta = 1.0 / (2.0 * gamma)
    hh = h
    xr = hh
    z = inc @ xr
    for _ in range(K):
        y = gamma * hh + (1.0 - gamma) * xr
        xr = y - gamma * (inc.T @ z)
        zb = z + beta * (inc @ xr)
        rn = jnp.sqrt(jnp.sum(zb * zb, axis=1, keepdims=True))
        sc = jnp.where(rn > 0.0,
                       jnp.minimum(rn, LAMBDA1) / jnp.where(rn > 0.0, rn, 1.0),
                       jnp.minimum(rn, LAMBDA1))
        z = sc * zb
    return xr


# ---------------------------------- main ------------------------------------ #

if __name__ == "__main__":
    N = 64  # number of nodes

    # deterministic synthetic graph: undirected ring + chords, both directions, no self loops
    src = np.arange(N)
    ring = np.stack([src, (src + 1) % N])
    chord = np.stack([src, (src + 7) % N])
    und = np.concatenate([ring, chord], axis=1)
    edge_index = np.concatenate([und, und[::-1]], axis=1).astype(np.int32)  # (2, 4N)

    key = jax.random.PRNGKey(0)
    k1, k2, k3, k4, k5 = jax.random.split(key, 5)
    x = jax.random.normal(k1, (N, IN_CHANNELS), jnp.float32)

    # deterministic PyTorch-Linear-style init: U(-1/sqrt(fan_in), 1/sqrt(fan_in))
    lim1 = 1.0 / np.sqrt(IN_CHANNELS)
    w1 = jax.random.uniform(k2, (IN_CHANNELS, HID), jnp.float32, -lim1, lim1)
    b1 = jax.random.uniform(k3, (1, HID), jnp.float32, -lim1, lim1)
    lim2 = 1.0 / np.sqrt(HID)
    w2 = jax.random.uniform(k4, (HID, OUT_CHANNELS), jnp.float32, -lim2, lim2)
    b2 = jax.random.uniform(k5, (1, OUT_CHANNELS), jnp.float32, -lim2, lim2)
    params = (w1, b1, w2, b2)

    # One-time preprocessing: normalized incident matrix (f32 for the reference,
    # bf16 for the kernel's MXU path).
    inc_np = build_normalized_incident(edge_index, N)          # (E, N), E = 2N here
    inc_f32 = jnp.asarray(inc_np)
    inc_bf16 = inc_f32.astype(jnp.bfloat16)

    out = elastic_gnn_forward(x, inc_bf16, params)
    out = jax.block_until_ready(out)

    ref = _reference(x, inc_f32, params)
    assert out.shape == (N, OUT_CHANNELS)
    # bf16 MXU operands accumulate a small error over K=3 steps; f32 reference tolerance
    # is relaxed accordingly.
    assert jnp.allclose(out, ref, atol=2e-2, rtol=2e-2), "mismatch vs pure-JAX reference"

    print("KERNEL_OK")
</pallas_src>

<mosaic_0001>
module attributes {stable_mosaic.version = 11 : i64} {
  func.func @_elastic_gnn_kernel(%arg0: memref<64x32xf32, #tpu.memory_space<vmem>>, %arg1: memref<32x16xf32, #tpu.memory_space<vmem>>, %arg2: memref<1x16xf32, #tpu.memory_space<vmem>>, %arg3: memref<16x8xf32, #tpu.memory_space<vmem>>, %arg4: memref<1x8xf32, #tpu.memory_space<vmem>>, %arg5: memref<128x64xbf16, #tpu.memory_space<vmem>>, %arg6: memref<64x8xf32, #tpu.memory_space<vmem>>) attributes {dimension_semantics = [], scalar_prefetch = 0 : i64, scratch_operands = 0 : i64, tpu.core_type = #tpu.core_type<tc>} {
    %c0 = arith.constant 0 : index
    %c0_0 = arith.constant 0 : index
    %0 = vector.load %arg0[%c0, %c0_0] : memref<64x32xf32, #tpu.memory_space<vmem>>, vector<64x32xf32>
    %c0_1 = arith.constant 0 : index
    %c0_2 = arith.constant 0 : index
    %1 = vector.load %arg1[%c0_1, %c0_2] : memref<32x16xf32, #tpu.memory_space<vmem>>, vector<32x16xf32>
    %cst = arith.constant dense<0.000000e+00> : vector<64x16xf32>
    %2 = tpu.matmul %0, %1, %cst {dimension_numbers = #tpu.dot_dimension_numbers<[1], [0], [0], [1], [0, 0, 1, 1], [], []>} : vector<64x32xf32>, vector<32x16xf32>, vector<64x16xf32> -> vector<64x16xf32>
    %c0_3 = arith.constant 0 : index
    %c0_4 = arith.constant 0 : index
    %3 = vector.load %arg2[%c0_3, %c0_4] : memref<1x16xf32, #tpu.memory_space<vmem>>, vector<1x16xf32>
    %4 = vector.broadcast %3 : vector<1x16xf32> to vector<64x16xf32>
    %5 = arith.addf %2, %4 : vector<64x16xf32>
    %cst_5 = arith.constant 0.000000e+00 : f32
    %6 = vector.broadcast %cst_5 : f32 to vector<64x16xf32>
    %7 = arith.maximumf %5, %6 : vector<64x16xf32>
    %c0_6 = arith.constant 0 : index
    %c0_7 = arith.constant 0 : index
    %8 = vector.load %arg3[%c0_6, %c0_7] : memref<16x8xf32, #tpu.memory_space<vmem>>, vector<16x8xf32>
    %cst_8 = arith.constant dense<0.000000e+00> : vector<64x8xf32>
    %9 = tpu.matmul %7, %8, %cst_8 {dimension_numbers = #tpu.dot_dimension_numbers<[1], [0], [0], [1], [0, 0, 1, 1], [], []>} : vector<64x16xf32>, vector<16x8xf32>, vector<64x8xf32> -> vector<64x8xf32>
    %c0_9 = arith.constant 0 : index
    %c0_10 = arith.constant 0 : index
    %10 = vector.load %arg4[%c0_9, %c0_10] : memref<1x8xf32, #tpu.memory_space<vmem>>, vector<1x8xf32>
    %11 = vector.broadcast %10 : vector<1x8xf32> to vector<64x8xf32>
    %12 = arith.addf %9, %11 : vector<64x8xf32>
    %c0_11 = arith.constant 0 : index
    %c0_12 = arith.constant 0 : index
    %13 = vector.load %arg5[%c0_11, %c0_12] : memref<128x64xbf16, #tpu.memory_space<vmem>>, vector<128x64xbf16>
    %cst_13 = arith.constant 2.500000e-01 : f32
    %14 = vector.broadcast %cst_13 : f32 to vector<64x8xf32>
    %15 = arith.mulf %14, %12 : vector<64x8xf32>
    %16 = arith.truncf %12 : vector<64x8xf32> to vector<64x8xbf16>
    %cst_14 = arith.constant dense<0.000000e+00> : vector<128x8xf32>
    %17 = tpu.matmul %13, %16, %cst_14 {dimension_numbers = #tpu.dot_dimension_numbers<[1], [0], [0], [1], [0, 0, 1, 1], [], []>} : vector<128x64xbf16>, vector<64x8xbf16>, vector<128x8xf32> -> vector<128x8xf32>
    %cst_15 = arith.constant 7.500000e-01 : f32
    %18 = vector.broadcast %cst_15 : f32 to vector<64x8xf32>
    %19 = arith.mulf %18, %12 : vector<64x8xf32>
    %20 = arith.addf %15, %19 : vector<64x8xf32>
    %21 = arith.truncf %17 : vector<128x8xf32> to vector<128x8xbf16>
    %cst_16 = arith.constant dense<0.000000e+00> : vector<64x8xf32>
    %22 = tpu.matmul %13, %21, %cst_16 {dimension_numbers = #tpu.dot_dimension_numbers<[0], [0], [1], [1], [0, 1, 1, 1], [], []>} : vector<128x64xbf16>, vector<128x8xbf16>, vector<64x8xf32> -> vector<64x8xf32>
    %cst_17 = arith.constant 2.500000e-01 : f32
    %23 = vector.broadcast %cst_17 : f32 to vector<64x8xf32>
    %24 = arith.mulf %23, %22 : vector<64x8xf32>
    %25 = arith.subf %20, %24 : vector<64x8xf32>
    %26 = arith.truncf %25 : vector<64x8xf32> to vector<64x8xbf16>
    %cst_18 = arith.constant dense<0.000000e+00> : vector<128x8xf32>
    %27 = tpu.matmul %13, %26, %cst_18 {dimension_numbers = #tpu.dot_dimension_numbers<[1], [0], [0], [1], [0, 0, 1, 1], [], []>} : vector<128x64xbf16>, vector<64x8xbf16>, vector<128x8xf32> -> vector<128x8xf32>
    %cst_19 = arith.constant 2.000000e+00 : f32
    %28 = vector.broadcast %cst_19 : f32 to vector<128x8xf32>
    %29 = arith.mulf %28, %27 : vector<128x8xf32>
    %30 = arith.addf %17, %29 : vector<128x8xf32>
    %31 = arith.mulf %30, %30 : vector<128x8xf32>
    %cst_20 = arith.constant dense<0.000000e+00> : vector<128xf32>
    %32 = vector.multi_reduction <add>, %31, %cst_20 [1] : vector<128x8xf32> to vector<128xf32>
    %33 = vector.shape_cast %32 : vector<128xf32> to vector<128x1xf32>
    %34 = math.rsqrt %33 : vector<128x1xf32>
    %cst_21 = arith.constant 3.000000e+00 : f32
    %35 = vector.broadcast %cst_21 : f32 to vector<128x1xf32>
    %36 = arith.mulf %35, %34 : vector<128x1xf32>
    %cst_22 = arith.constant 1.000000e+00 : f32
    %37 = vector.broadcast %cst_22 : f32 to vector<128x1xf32>
    %38 = arith.minimumf %37, %36 : vector<128x1xf32>
    %39 = vector.broadcast %38 : vector<128x1xf32> to vector<128x8xf32>
    %40 = arith.mulf %39, %30 : vector<128x8xf32>
    %cst_23 = arith.constant 7.500000e-01 : f32
    %41 = vector.broadcast %cst_23 : f32 to vector<64x8xf32>
    %42 = arith.mulf %41, %25 : vector<64x8xf32>
    %43 = arith.addf %15, %42 : vector<64x8xf32>
    %44 = arith.truncf %40 : vector<128x8xf32> to vector<128x8xbf16>
    %cst_24 = arith.constant dense<0.000000e+00> : vector<64x8xf32>
    %45 = tpu.matmul %13, %44, %cst_24 {dimension_numbers = #tpu.dot_dimension_numbers<[0], [0], [1], [1], [0, 1, 1, 1], [], []>} : vector<128x64xbf16>, vector<128x8xbf16>, vector<64x8xf32> -> vector<64x8xf32>
    %cst_25 = arith.constant 2.500000e-01 : f32
    %46 = vector.broadcast %cst_25 : f32 to vector<64x8xf32>
    %47 = arith.mulf %46, %45 : vector<64x8xf32>
    %48 = arith.subf %43, %47 : vector<64x8xf32>
    %49 = arith.truncf %48 : vector<64x8xf32> to vector<64x8xbf16>
    %cst_26 = arith.constant dense<0.000000e+00> : vector<128x8xf32>
    %50 = tpu.matmul %13, %49, %cst_26 {dimension_numbers = #tpu.dot_dimension_numbers<[1], [0], [0], [1], [0, 0, 1, 1], [], []>} : vector<128x64xbf16>, vector<64x8xbf16>, vector<128x8xf32> -> vector<128x8xf32>
    %cst_27 = arith.constant 2.000000e+00 : f32
    %51 = vector.broadcast %cst_27 : f32 to vector<128x8xf32>
    %52 = arith.mulf %51, %50 : vector<128x8xf32>
    %53 = arith.addf %40, %52 : vector<128x8xf32>
    %54 = arith.mulf %53, %53 : vector<128x8xf32>
    %cst_28 = arith.constant dense<0.000000e+00> : vector<128xf32>
    %55 = vector.multi_reduction <add>, %54, %cst_28 [1] : vector<128x8xf32> to vector<128xf32>
    %56 = vector.shape_cast %55 : vector<128xf32> to vector<128x1xf32>
    %57 = math.rsqrt %56 : vector<128x1xf32>
    %cst_29 = arith.constant 3.000000e+00 : f32
    %58 = vector.broadcast %cst_29 : f32 to vector<128x1xf32>
    %59 = arith.mulf %58, %57 : vector<128x1xf32>
    %cst_30 = arith.constant 1.000000e+00 : f32
    %60 = vector.broadcast %cst_30 : f32 to vector<128x1xf32>
    %61 = arith.minimumf %60, %59 : vector<128x1xf32>
    %62 = vector.broadcast %61 : vector<128x1xf32> to vector<128x8xf32>
    %63 = arith.mulf %62, %53 : vector<128x8xf32>
    %cst_31 = arith.constant 7.500000e-01 : f32
    %64 = vector.broadcast %cst_31 : f32 to vector<64x8xf32>
    %65 = arith.mulf %64, %48 : vector<64x8xf32>
    %66 = arith.addf %15, %65 : vector<64x8xf32>
    %67 = arith.truncf %63 : vector<128x8xf32> to vector<128x8xbf16>
    %cst_32 = arith.constant dense<0.000000e+00> : vector<64x8xf32>
    %68 = tpu.matmul %13, %67, %cst_32 {dimension_numbers = #tpu.dot_dimension_numbers<[0], [0], [1], [1], [0, 1, 1, 1], [], []>} : vector<128x64xbf16>, vector<128x8xbf16>, vector<64x8xf32> -> vector<64x8xf32>
    %cst_33 = arith.constant 2.500000e-01 : f32
    %69 = vector.broadcast %cst_33 : f32 to vector<64x8xf32>
    %70 = arith.mulf %69, %68 : vector<64x8xf32>
    %71 = arith.subf %66, %70 : vector<64x8xf32>
    %c0_34 = arith.constant 0 : index
    %c0_35 = arith.constant 0 : index
    %72 = vector.load %arg6[%c0_34, %c0_35] : memref<64x8xf32, #tpu.memory_space<vmem>>, vector<64x8xf32>
    tpu.vector_store %arg6[%c0_34, %c0_35], %71 {strides = array<i32>} : memref<64x8xf32, #tpu.memory_space<vmem>>, vector<64x8xf32>,
    return
  }
}

</mosaic_0001>

<llo_original>
// kernel: elastic_gnn_forward.1
$region0: #{elastic_gnn_forward.1}
  #allocation0 [shape = 'u32[]', space=smem, size = 0x4, offset = 0x4, fixed_abs, tag = 'smem constant byte address 0x4 - core index']
  #allocation1 [shape = 'u32[144,128]{1,0:T(1,128)}', space=vmem, size = 0x12000, scoped, tag = 'internal scratch']
  %s0 = inlined_call_operand.vmem [shape: f32[64,32], index: 0, kind: input, shape index: {}]
  %s1 = inlined_call_operand.vmem [shape: f32[32,16], index: 1, kind: input, shape index: {}]
  %s2 = inlined_call_operand.vmem [shape: f32[1,16], index: 2, kind: input, shape index: {}]
  %s3 = inlined_call_operand.vmem [shape: f32[16,8], index: 3, kind: input, shape index: {}]
  %s4 = inlined_call_operand.vmem [shape: f32[1,8], index: 4, kind: input, shape index: {}]
  %s5 = inlined_call_operand.vmem [shape: bf16[128,64], index: 5, kind: input, shape index: {}]
  %s6 = inlined_call_operand.vmem [shape: f32[64,8], index: 6, kind: output, shape index: {}]
  %s7 = sld [smem:[#allocation0]]
  $region34: #{elastic_gnn_forward.1} parent=0
    _
  %s9 = ssub.s32 1, %s7
  %s10 = scalar_select 0, %s9, %s7
  // Predicated region
  $region2: #{elastic_gnn_forward.1} parent=0 // pred_check
    _
  $region3: #{elastic_gnn_forward.1} parent=0 // pred_check_branch
    %12 = sbr.rel (0) target = $region5
  $region4: #{elastic_gnn_forward.1} parent=0 // pred_region
    _
  $region5: #{elastic_gnn_forward.1} parent=0 // pred_fallthru
    _
  // Predicated region
  $region6: #{elastic_gnn_forward.1} parent=0 // pred_check
    _
  $region7: #{elastic_gnn_forward.1} parent=0 // pred_check_branch
    %14 = sbr.rel (0) target = $region9
  $region8: #{elastic_gnn_forward.1} parent=0 // pred_region
    _
  $region9: #{elastic_gnn_forward.1} parent=0 // pred_fallthru
    _
  // Predicated region
  $region10: #{elastic_gnn_forward.1} parent=0 // pred_check
    _
  $region11: #{elastic_gnn_forward.1} parent=0 // pred_check_branch
    %16 = sbr.rel (0) target = $region13
  $region12: #{elastic_gnn_forward.1} parent=0 // pred_region
    _
  $region13: #{elastic_gnn_forward.1} parent=0 // pred_fallthru
    _
  // Predicated region
  $region14: #{elastic_gnn_forward.1} parent=0 // pred_check
    _
  $region15: #{elastic_gnn_forward.1} parent=0 // pred_check_branch
    %18 = sbr.rel (0) target = $region17
  $region16: #{elastic_gnn_forward.1} parent=0 // pred_region
    _
  $region17: #{elastic_gnn_forward.1} parent=0 // pred_fallthru
    _
  // Predicated region
  $region18: #{elastic_gnn_forward.1} parent=0 // pred_check
    _
  $region19: #{elastic_gnn_forward.1} parent=0 // pred_check_branch
    %20 = sbr.rel (0) target = $region21
  $region20: #{elastic_gnn_forward.1} parent=0 // pred_region
    _
  $region21: #{elastic_gnn_forward.1} parent=0 // pred_fallthru
    _
  // Predicated region
  $region22: #{elastic_gnn_forward.1} parent=0 // pred_check
    _
  $region23: #{elastic_gnn_forward.1} parent=0 // pred_check_branch
    %22 = sbr.rel (0) target = $region25
  $region24: #{elastic_gnn_forward.1} parent=0 // pred_region
    _
  $region25: #{elastic_gnn_forward.1} parent=0 // pred_fallthru
    _
  %v24 = vld [vmem:[%s0] sm:$0xff]
  %v25 = vld [vmem:[%s0 + $0x8] sm:$0xff]
  %v26 = vld [vmem:[%s0 + $0x10] sm:$0xff]
  %v27 = vld [vmem:[%s0 + $0x18] sm:$0xff]
  %v28 = vld [vmem:[%s0 + $0x20] sm:$0xff]
  %v29 = vld [vmem:[%s0 + $0x28] sm:$0xff]
  %v30 = vld [vmem:[%s0 + $0x30] sm:$0xff]
  %v31 = vld [vmem:[%s0 + $0x38] sm:$0xff]
  %v32 = vld [vmem:[%s1] sm:$0xff]
  %v33 = vld [vmem:[%s1 + $0x8] sm:$0xff]
  %v34 = vld [vmem:[%s1 + $0x10] sm:$0xff]
  %v35 = vld [vmem:[%s1 + $0x18] sm:$0xff]
  %v36 = vld [vmem:[%s2] sm:$0x1]
  %v38 = vlaneseq
  %v39 = vshrl.u32 %v38, 7
  %v40 = vsub.s32 0, %v39
  %v41 = vrot.slane %v36, %v40
  %vm43 = vcmask 261120
  %v45 = vsel %vm43, %v24, 0
  %v48 = vsel %vm43, %v25, 0
  %v51 = vsel %vm43, %v26, 0
  %v54 = vsel %vm43, %v27, 0
  %v57 = vsel %vm43, %v28, 0
  %v60 = vsel %vm43, %v29, 0
  %v63 = vsel %vm43, %v30, 0
  %v66 = vsel %vm43, %v31, 0
  %68 = vmatprep.subr.mxu0 0.0
  %69 = vmatpush1.msra.mxu0 %v32
  %70 = vmatprep.subr.mxu0 0.0
  %71 = vmatpush1.msra.mxu0 %v33
  %72 = vmatprep.subr.mxu0 0.0
  %73 = vmatpush1.msra.mxu0 %v34
  %74 = vmatprep.subr.mxu0 0.0
  %75 = vmatpush1.msra.mxu0 %v35
  %76 = vmatprep.subr.mxu0 0.0
  %77 = vmatpush1.msra.mxu0 0.0
  %78 = vmatprep.subr.mxu0 0.0
  %79 = vmatpush1.msra.mxu0 0.0
  %80 = vmatprep.subr.mxu0 0.0
  %81 = vmatpush1.msra.mxu0 0.0
  %82 = vmatprep.subr.mxu0 0.0
  %83 = vmatpush1.msra.mxu0 0.0
  %84 = vmatprep.subr.mxu0 0.0
  %85 = vmatpush1.msra.mxu0 0.0
  %86 = vmatprep.subr.mxu0 0.0
  %87 = vmatpush1.msra.mxu0 0.0
  %88 = vmatprep.subr.mxu0 0.0
  %89 = vmatpush1.msra.mxu0 0.0
  %90 = vmatprep.subr.mxu0 0.0
  %91 = vmatpush1.msra.mxu0 0.0
  %92 = vmatprep.subr.mxu0 0.0
  %93 = vmatpush1.msra.mxu0 0.0
  %94 = vmatprep.subr.mxu0 0.0
  %95 = vmatpush1.msra.mxu0 0.0
  %96 = vmatprep.subr.mxu0 0.0
  %97 = vmatpush1.msra.mxu0 0.0
  %98 = vmatprep.subr.mxu0 0.0
  %99 = vmatpush1.msra.mxu0 0.0
  %100 = vmatprep.subr.mxu0 0.0
  %101 = vmatpush1.msra.mxu0 0.0
  %102 = vmatprep.subr.mxu0 0.0
  %103 = vmatpush1.msra.mxu0 0.0
  %104 = vmatprep.subr.mxu0 0.0
  %105 = vmatpush1.msra.mxu0 0.0
  %106 = vmatprep.subr.mxu0 0.0
  %107 = vmatpush1.msra.mxu0 0.0
  %108 = vmatprep.subr.mxu0 0.0
  %109 = vmatpush1.msra.mxu0 0.0
  %110 = vmatprep.subr.mxu0 0.0
  %111 = vmatpush1.msra.mxu0 0.0
  %112 = vmatprep.subr.mxu0 0.0
  %113 = vmatpush1.msra.mxu0 0.0
  %114 = vmatprep.subr.mxu0 0.0
  %115 = vmatpush1.msra.mxu0 0.0
  %116 = vmatprep.subr.mxu0 0.0
  %117 = vmatpush1.msra.mxu0 0.0
  %118 = vmatprep.subr.mxu0 0.0
  %119 = vmatpush1.msra.mxu0 0.0
  %120 = vmatprep.subr.mxu0 0.0
  %121 = vmatpush1.msra.mxu0 0.0
  %122 = vmatprep.subr.mxu0 0.0
  %123 = vmatpush1.msra.mxu0 0.0
  %124 = vmatprep.subr.mxu0 0.0
  %125 = vmatpush1.msra.mxu0 0.0
  %126 = vmatprep.subr.mxu0 0.0
  %127 = vmatpush1.msra.mxu0 0.0
  %128 = vmatprep.subr.mxu0 0.0
  %129 = vmatpush1.msra.mxu0 0.0
  %130 = vmatprep.subr.mxu0 0.0
  %131 = vmatpush1.msra.mxu0 0.0
  %132 = vmatprep.mubr.f32.mxu0 0.0
  %133 = vmatmul.mubr.f32.gmra.mrb[0].mxu0 %v45
  %v134 = vpop.f32.mrb[0].mxu0
  %v135 = vadd.f32 %v41, %v134
  %v136 = vpop.f32.mrb[0].mxu0
  %137 = vmatprep.mubr.f32.mxu0 0.0
  %138 = vmatmul.mubr.f32.gmra.mrb[0].mxu0 %v48
  %v139 = vpop.f32.mrb[0].mxu0
  %v140 = vadd.f32 %v41, %v139
  %v141 = vpop.f32.mrb[0].mxu0
  %142 = vmatprep.mubr.f32.mxu0 0.0
  %143 = vmatmul.mubr.f32.gmra.mrb[0].mxu0 %v51
  %v144 = vpop.f32.mrb[0].mxu0
  %v145 = vadd.f32 %v41, %v144
  %v146 = vpop.f32.mrb[0].mxu0
  %147 = vmatprep.mubr.f32.mxu0 0.0
  %148 = vmatmul.mubr.f32.gmra.mrb[0].mxu0 %v54
  %v149 = vpop.f32.mrb[0].mxu0
  %v150 = vadd.f32 %v41, %v149
  %v151 = vpop.f32.mrb[0].mxu0
  %152 = vmatprep.mubr.f32.mxu0 0.0
  %153 = vmatmul.mubr.f32.gmra.mrb[0].mxu0 %v57
  %v154 = vpop.f32.mrb[0].mxu0
  %v155 = vadd.f32 %v41, %v154
  %v156 = vpop.f32.mrb[0].mxu0
  %157 = vmatprep.mubr.f32.mxu0 0.0
  %158 = vmatmul.mubr.f32.gmra.mrb[0].mxu0 %v60
  %v159 = vpop.f32.mrb[0].mxu0
  %v160 = vadd.f32 %v41, %v159
  %v161 = vpop.f32.mrb[0].mxu0
  %162 = vmatprep.mubr.f32.mxu0 0.0
  %163 = vmatmul.mubr.f32.gmra.mrb[0].mxu0 %v63
  %v164 = vpop.f32.mrb[0].mxu0
  %v165 = vadd.f32 %v41, %v164
  %v166 = vpop.f32.mrb[0].mxu0
  %167 = vmatprep.mubr.f32.mxu0 0.0
  %168 = vmatmul.mubr.f32.gmra.mrb[0].mxu0 %v66
  %v169 = vpop.f32.mrb[0].mxu0
  %v170 = vadd.f32 %v41, %v169
  %v171 = vpop.f32.mrb[0].mxu0
  %172 = vdwg.mxu0
  %v173 = vmax.f32 %v135, 0.0
  %v174 = vmax.f32 %v140, 0.0
  %v175 = vmax.f32 %v145, 0.0
  %v176 = vmax.f32 %v150, 0.0
  %v177 = vmax.f32 %v155, 0.0
  %v178 = vmax.f32 %v160, 0.0
  %v179 = vmax.f32 %v165, 0.0
  %v180 = vmax.f32 %v170, 0.0
  %v181 = vld [vmem:[%s3] sm:$0xff]
  %v182 = vld [vmem:[%s3 + $0x8] sm:$0xff]
  %v183 = vld [vmem:[%s4] sm:$0x1]
  %v185 = vlaneseq
  %v186 = vshrl.u32 %v185, 7
  %v187 = vsub.s32 0, %v186
  %v188 = vrot.slane %v183, %v187
  %vm190 = vcmask 130048
  %v192 = vsel %vm190, %v173, 0
  %v195 = vsel %vm190, %v174, 0
  %v198 = vsel %vm190, %v175, 0
  %v201 = vsel %vm190, %v176, 0
  %v204 = vsel %vm190, %v177, 0
  %v207 = vsel %vm190, %v178, 0
  %v210 = vsel %vm190, %v179, 0
  %v213 = vsel %vm190, %v180, 0
  %215 = vmatprep.subr.mxu0 0.0
  %216 = vmatpush1.msra.mxu0 %v181
  %217 = vmatprep.subr.mxu0 0.0
  %218 = vmatpush1.msra.mxu0 %v182
  %219 = vmatprep.subr.mxu0 0.0
  %220 = vmatpush1.msra.mxu0 0.0
  %221 = vmatprep.subr.mxu0 0.0
  %222 = vmatpush1.msra.mxu0 0.0
  %223 = vmatprep.subr.mxu0 0.0
  %224 = vmatpush1.msra.mxu0 0.0
  %225 = vmatprep.subr.mxu0 0.0
  %226 = vmatpush1.msra.mxu0 0.0
  %227 = vmatprep.subr.mxu0 0.0
  %228 = vmatpush1.msra.mxu0 0.0
  %229 = vmatprep.subr.mxu0 0.0
  %230 = vmatpush1.msra.mxu0 0.0
  %231 = vmatprep.subr.mxu0 0.0
  %232 = vmatpush1.msra.mxu0 0.0
  %233 = vmatprep.subr.mxu0 0.0
  %234 = vmatpush1.msra.mxu0 0.0
  %235 = vmatprep.subr.mxu0 0.0
  %236 = vmatpush1.msra.mxu0 0.0
  %237 = vmatprep.subr.mxu0 0.0
  %238 = vmatpush1.msra.mxu0 0.0
  %239 = vmatprep.subr.mxu0 0.0
  %240 = vmatpush1.msra.mxu0 0.0
  %241 = vmatprep.subr.mxu0 0.0
  %242 = vmatpush1.msra.mxu0 0.0
  %243 = vmatprep.subr.mxu0 0.0
  %244 = vmatpush1.msra.mxu0 0.0
  %245 = vmatprep.subr.mxu0 0.0
  %246 = vmatpush1.msra.mxu0 0.0
  %247 = vmatprep.subr.mxu0 0.0
  %248 = vmatpush1.msra.mxu0 0.0
  %249 = vmatprep.subr.mxu0 0.0
  %250 = vmatpush1.msra.mxu0 0.0
  %251 = vmatprep.subr.mxu0 0.0
  %252 = vmatpush1.msra.mxu0 0.0
  %253 = vmatprep.subr.mxu0 0.0
  %254 = vmatpush1.msra.mxu0 0.0
  %255 = vmatprep.subr.mxu0 0.0
  %256 = vmatpush1.msra.mxu0 0.0
  %257 = vmatprep.subr.mxu0 0.0
  %258 = vmatpush1.msra.mxu0 0.0
  %259 = vmatprep.subr.mxu0 0.0
  %260 = vmatpush1.msra.mxu0 0.0
  %261 = vmatprep.subr.mxu0 0.0
  %262 = vmatpush1.msra.mxu0 0.0
  %263 = vmatprep.subr.mxu0 0.0
  %264 = vmatpush1.msra.mxu0 0.0
  %265 = vmatprep.subr.mxu0 0.0
  %266 = vmatpush1.msra.mxu0 0.0
  %267 = vmatprep.subr.mxu0 0.0
  %268 = vmatpush1.msra.mxu0 0.0
  %269 = vmatprep.subr.mxu0 0.0
  %270 = vmatpush1.msra.mxu0 0.0
  %271 = vmatprep.subr.mxu0 0.0
  %272 = vmatpush1.msra.mxu0 0.0
  %273 = vmatprep.subr.mxu0 0.0
  %274 = vmatpush1.msra.mxu0 0.0
  %275 = vmatprep.subr.mxu0 0.0
  %276 = vmatpush1.msra.mxu0 0.0
  %277 = vmatprep.subr.mxu0 0.0
  %278 = vmatpush1.msra.mxu0 0.0
  %279 = vmatprep.mubr.f32.mxu0 0.0
  %280 = vmatmul.mubr.f32.gmra.mrb[0].mxu0 %v192
  %v281 = vpop.f32.mrb[0].mxu0
  %v282 = vadd.f32 %v188, %v281
  %v283 = vpop.f32.mrb[0].mxu0
  %284 = vmatprep.mubr.f32.mxu0 0.0
  %285 = vmatmul.mubr.f32.gmra.mrb[0].mxu0 %v195
  %v286 = vpop.f32.mrb[0].mxu0
  %v287 = vadd.f32 %v188, %v286
  %v288 = vpop.f32.mrb[0].mxu0
  %289 = vmatprep.mubr.f32.mxu0 0.0
  %290 = vmatmul.mubr.f32.gmra.mrb[0].mxu0 %v198
  %v291 = vpop.f32.mrb[0].mxu0
  %v292 = vadd.f32 %v188, %v291
  %v293 = vpop.f32.mrb[0].mxu0
  %294 = vmatprep.mubr.f32.mxu0 0.0
  %295 = vmatmul.mubr.f32.gmra.mrb[0].mxu0 %v201
  %v296 = vpop.f32.mrb[0].mxu0
  %v297 = vadd.f32 %v188, %v296
  %v298 = vpop.f32.mrb[0].mxu0
  %299 = vmatprep.mubr.f32.mxu0 0.0
  %300 = vmatmul.mubr.f32.gmra.mrb[0].mxu0 %v204
  %v301 = vpop.f32.mrb[0].mxu0
  %v302 = vadd.f32 %v188, %v301
  %v303 = vpop.f32.mrb[0].mxu0
  %304 = vmatprep.mubr.f32.mxu0 0.0
  %305 = vmatmul.mubr.f32.gmra.mrb[0].mxu0 %v207
  %v306 = vpop.f32.mrb[0].mxu0
  %v307 = vadd.f32 %v188, %v306
  %v308 = vpop.f32.mrb[0].mxu0
  %309 = vmatprep.mubr.f32.mxu0 0.0
  %310 = vmatmul.mubr.f32.gmra.mrb[0].mxu0 %v210
  %v311 = vpop.f32.mrb[0].mxu0
  %v312 = vadd.f32 %v188, %v311
  %v313 = vpop.f32.mrb[0].mxu0
  %314 = vmatprep.mubr.f32.mxu0 0.0
  %315 = vmatmul.mubr.f32.gmra.mrb[0].mxu0 %v213
  %v316 = vpop.f32.mrb[0].mxu0
  %v317 = vadd.f32 %v188, %v316
  %v318 = vpop.f32.mrb[0].mxu0
  %319 = vdwg.mxu0
  %v320 = vld [vmem:[%s5] sm:$0xf]
  %v321 = vld [vmem:[%s5 + $0x4] sm:$0xf]
  %v322 = vld [vmem:[%s5 + $0x8] sm:$0xf]
  %v323 = vld [vmem:[%s5 + $0xc] sm:$0xf]
  %v324 = vld [vmem:[%s5 + $0x10] sm:$0xf]
  %v325 = vld [vmem:[%s5 + $0x14] sm:$0xf]
  %v326 = vld [vmem:[%s5 + $0x18] sm:$0xf]
  %v327 = vld [vmem:[%s5 + $0x1c] sm:$0xf]
  %v328 = vld [vmem:[%s5 + $0x20] sm:$0xf]
  %v329 = vld [vmem:[%s5 + $0x24] sm:$0xf]
  %v330 = vld [vmem:[%s5 + $0x28] sm:$0xf]
  %v331 = vld [vmem:[%s5 + $0x2c] sm:$0xf]
  %v332 = vld [vmem:[%s5 + $0x30] sm:$0xf]
  %v333 = vld [vmem:[%s5 + $0x34] sm:$0xf]
  %v334 = vld [vmem:[%s5 + $0x38] sm:$0xf]
  %v335 = vld [vmem:[%s5 + $0x3c] sm:$0xf]
  %v336 = vmul.f32 %v282, 0.25
  %v337 = vmul.f32 %v287, 0.25
  %v338 = vmul.f32 %v292, 0.25
  %v339 = vmul.f32 %v297, 0.25
  %v340 = vmul.f32 %v302, 0.25
  %v341 = vmul.f32 %v307, 0.25
  %v342 = vmul.f32 %v312, 0.25
  %v343 = vmul.f32 %v317, 0.25
  %v344 = vpack.c.bf16 %v287, %v282
  %v345 = vpack.c.bf16 %v297, %v292
  %v346 = vpack.c.bf16 %v307, %v302
  %v347 = vpack.c.bf16 %v317, %v312
  %v364 = vunpack.c.l.b16 %v320
  %v365 = vunpack.c.l.b16 %v321
  %v366 = vunpack.c.l.b16 %v322
  %v367 = vunpack.c.l.b16 %v323
  %v368 = vunpack.c.l.b16 %v324
  %v369 = vunpack.c.l.b16 %v325
  %v370 = vunpack.c.l.b16 %v326
  %v371 = vunpack.c.l.b16 %v327
  %v372 = vunpack.c.l.b16 %v328
  %v373 = vunpack.c.l.b16 %v329
  %v374 = vunpack.c.l.b16 %v330
  %v375 = vunpack.c.l.b16 %v331
  %v376 = vunpack.c.l.b16 %v332
  %v377 = vunpack.c.l.b16 %v333
  %v378 = vunpack.c.l.b16 %v334
  %v379 = vunpack.c.l.b16 %v335
  %v380 = vpack.c.b16 %v365, %v364
  %v381 = vpack.c.b16 %v367, %v366
  %v382 = vpack.c.b16 %v369, %v368
  %v383 = vpack.c.b16 %v371, %v370
  %v384 = vpack.c.b16 %v373, %v372
  %v385 = vpack.c.b16 %v375, %v374
  %v386 = vpack.c.b16 %v377, %v376
  %v387 = vpack.c.b16 %v379, %v378
  %vm388 = vcmask 523264
  %v390 = vsel %vm388, %v380, 0
  %v393 = vsel %vm388, %v381, 0
  %v396 = vsel %vm388, %v382, 0
  %v399 = vsel %vm388, %v383, 0
  %v402 = vsel %vm388, %v384, 0
  %v405 = vsel %vm388, %v385, 0
  %v408 = vsel %vm388, %v386, 0
  %v411 = vsel %vm388, %v387, 0
  %413 = vmatprep.subr.bf16.mxu0 0
  %414 = vmatpush1.bf16.msra.mxu0 %v344
  %415 = vmatprep.subr.bf16.mxu0 0
  %416 = vmatpush1.bf16.msra.mxu0 %v345
  %417 = vmatprep.subr.bf16.mxu0 0
  %418 = vmatpush1.bf16.msra.mxu0 %v346
  %419 = vmatprep.subr.bf16.mxu0 0
  %420 = vmatpush1.bf16.msra.mxu0 %v347
  %421 = vmatprep.subr.bf16.mxu0 0
  %422 = vmatpush1.bf16.msra.mxu0 0
  %423 = vmatprep.subr.bf16.mxu0 0
  %424 = vmatpush1.bf16.msra.mxu0 0
  %425 = vmatprep.subr.bf16.mxu0 0
  %426 = vmatpush1.bf16.msra.mxu0 0
  %427 = vmatprep.subr.bf16.mxu0 0
  %428 = vmatpush1.bf16.msra.mxu0 0
  %429 = vmatprep.subr.bf16.mxu0 0
  %430 = vmatpush1.bf16.msra.mxu0 0
  %431 = vmatprep.subr.bf16.mxu0 0
  %432 = vmatpush1.bf16.msra.mxu0 0
  %433 = vmatprep.subr.bf16.mxu0 0
  %434 = vmatpush1.bf16.msra.mxu0 0
  %435 = vmatprep.subr.bf16.mxu0 0
  %436 = vmatpush1.bf16.msra.mxu0 0
  %437 = vmatprep.subr.bf16.mxu0 0
  %438 = vmatpush1.bf16.msra.mxu0 0
  %439 = vmatprep.subr.bf16.mxu0 0
  %440 = vmatpush1.bf16.msra.mxu0 0
  %441 = vmatprep.subr.bf16.mxu0 0
  %442 = vmatpush1.bf16.msra.mxu0 0
  %443 = vmatprep.subr.bf16.mxu0 0
  %444 = vmatpush1.bf16.msra.mxu0 0
  %445 = vmatprep.mubr.bf16.mxu0 0
  %446 = vmatmul.mubr.bf16.gmra.mrb[0].mxu0 %v390
  %v447 = vpop.f32.mrb[0].mxu0
  %v448 = vadd.f32 0.0, %v447
  %v449 = vpop.f32.mrb[0].mxu0
  %v450 = vpop.f32.mrb[0].mxu0
  %v451 = vadd.f32 0.0, %v450
  %v452 = vpop.f32.mrb[0].mxu0
  %453 = vmatprep.mubr.bf16.mxu0 0
  %454 = vmatmul.mubr.bf16.gmra.mrb[0].mxu0 %v393
  %v455 = vpop.f32.mrb[0].mxu0
  %v456 = vadd.f32 0.0, %v455
  %v457 = vpop.f32.mrb[0].mxu0
  %v458 = vpop.f32.mrb[0].mxu0
  %v459 = vadd.f32 0.0, %v458
  %v460 = vpop.f32.mrb[0].mxu0
  %461 = vmatprep.mubr.bf16.mxu0 0
  %462 = vmatmul.mubr.bf16.gmra.mrb[0].mxu0 %v396
  %v463 = vpop.f32.mrb[0].mxu0
  %v464 = vadd.f32 0.0, %v463
  %v465 = vpop.f32.mrb[0].mxu0
  %v466 = vpop.f32.mrb[0].mxu0
  %v467 = vadd.f32 0.0, %v466
  %v468 = vpop.f32.mrb[0].mxu0
  %469 = vmatprep.mubr.bf16.mxu0 0
  %470 = vmatmul.mubr.bf16.gmra.mrb[0].mxu0 %v399
  %v471 = vpop.f32.mrb[0].mxu0
  %v472 = vadd.f32 0.0, %v471
  %v473 = vpop.f32.mrb[0].mxu0
  %v474 = vpop.f32.mrb[0].mxu0
  %v475 = vadd.f32 0.0, %v474
  %v476 = vpop.f32.mrb[0].mxu0
  %477 = vmatprep.mubr.bf16.mxu0 0
  %478 = vmatmul.mubr.bf16.gmra.mrb[0].mxu0 %v402
  %v479 = vpop.f32.mrb[0].mxu0
  %v480 = vadd.f32 0.0, %v479
  %v481 = vpop.f32.mrb[0].mxu0
  %v482 = vpop.f32.mrb[0].mxu0
  %v483 = vadd.f32 0.0, %v482
  %v484 = vpop.f32.mrb[0].mxu0
  %485 = vmatprep.mubr.bf16.mxu0 0
  %486 = vmatmul.mubr.bf16.gmra.mrb[0].mxu0 %v405
  %v487 = vpop.f32.mrb[0].mxu0
  %v488 = vadd.f32 0.0, %v487
  %v489 = vpop.f32.mrb[0].mxu0
  %v490 = vpop.f32.mrb[0].mxu0
  %v491 = vadd.f32 0.0, %v490
  %v492 = vpop.f32.mrb[0].mxu0
  %493 = vmatprep.mubr.bf16.mxu0 0
  %494 = vmatmul.mubr.bf16.gmra.mrb[0].mxu0 %v408
  %v495 = vpop.f32.mrb[0].mxu0
  %v496 = vadd.f32 0.0, %v495
  %v497 = vpop.f32.mrb[0].mxu0
  %v498 = vpop.f32.mrb[0].mxu0
  %v499 = vadd.f32 0.0, %v498
  %v500 = vpop.f32.mrb[0].mxu0
  %501 = vmatprep.mubr.bf16.mxu0 0
  %502 = vmatmul.mubr.bf16.gmra.mrb[0].mxu0 %v411
  %v503 = vpop.f32.mrb[0].mxu0
  %v504 = vadd.f32 0.0, %v503
  %v505 = vpop.f32.mrb[0].mxu0
  %v506 = vpop.f32.mrb[0].mxu0
  %v507 = vadd.f32 0.0, %v506
  %v508 = vpop.f32.mrb[0].mxu0
  %509 = vdwg.mxu0
  %v510 = vmul.f32 %v282, 0.75
  %v511 = vmul.f32 %v287, 0.75
  %v512 = vmul.f32 %v292, 0.75
  %v513 = vmul.f32 %v297, 0.75
  %v514 = vmul.f32 %v302, 0.75
  %v515 = vmul.f32 %v307, 0.75
  %v516 = vmul.f32 %v312, 0.75
  %v517 = vmul.f32 %v317, 0.75
  %v518 = vadd.f32 %v336, %v510
  %v519 = vadd.f32 %v337, %v511
  %v520 = vadd.f32 %v338, %v512
  %v521 = vadd.f32 %v339, %v513
  %v522 = vadd.f32 %v340, %v514
  %v523 = vadd.f32 %v341, %v515
  %v524 = vadd.f32 %v342, %v516
  %v525 = vadd.f32 %v343, %v517
  %v526 = vpack.c.bf16 %v451, %v448
  %v527 = vpack.c.bf16 %v459, %v456
  %v528 = vpack.c.bf16 %v467, %v464
  %v529 = vpack.c.bf16 %v475, %v472
  %v530 = vpack.c.bf16 %v483, %v480
  %v531 = vpack.c.bf16 %v491, %v488
  %v532 = vpack.c.bf16 %v499, %v496
  %v533 = vpack.c.bf16 %v507, %v504
  %542 = vxpose.xlu0.c.b16.start [1/8] %v380, 128
  %543 = vxpose.xlu0.c.b16.cont [2/8] %v381, 128
  %544 = vxpose.xlu0.c.b16.cont [3/8] %v382, 128
  %545 = vxpose.xlu0.c.b16.cont [4/8] %v383, 128
  %546 = vxpose.xlu0.c.b16.cont [5/8] %v384, 128
  %547 = vxpose.xlu0.c.b16.cont [6/8] %v385, 128
  %548 = vxpose.xlu0.c.b16.cont [7/8] %v386, 128
  %549 = vxpose.xlu0.c.b16.end [8/8] %v387, 128
  %v550 = vpop.trf.xlu0
  %v551 = vpop.trf.xlu0
  %v552 = vpop.trf.xlu0
  %v553 = vpop.trf.xlu0
  %v554 = vpop.trf.xlu0
  %v555 = vpop.trf.xlu0
  %v556 = vpop.trf.xlu0
  %v557 = vpop.trf.xlu0
  %558 = vmatprep.subr.bf16.mxu0 0
  %559 = vmatpush1.bf16.msra.mxu0 %v526
  %560 = vmatprep.subr.bf16.mxu0 0
  %561 = vmatpush1.bf16.msra.mxu0 %v527
  %562 = vmatprep.subr.bf16.mxu0 0
  %563 = vmatpush1.bf16.msra.mxu0 %v528
  %564 = vmatprep.subr.bf16.mxu0 0
  %565 = vmatpush1.bf16.msra.mxu0 %v529
  %566 = vmatprep.subr.bf16.mxu0 0
  %567 = vmatpush1.bf16.msra.mxu0 %v530
  %568 = vmatprep.subr.bf16.mxu0 0
  %569 = vmatpush1.bf16.msra.mxu0 %v531
  %570 = vmatprep.subr.bf16.mxu0 0
  %571 = vmatpush1.bf16.msra.mxu0 %v532
  %572 = vmatprep.subr.bf16.mxu0 0
  %573 = vmatpush1.bf16.msra.mxu0 %v533
  %574 = vmatprep.subr.bf16.mxu0 0
  %575 = vmatpush1.bf16.msra.mxu0 0
  %576 = vmatprep.subr.bf16.mxu0 0
  %577 = vmatpush1.bf16.msra.mxu0 0
  %578 = vmatprep.subr.bf16.mxu0 0
  %579 = vmatpush1.bf16.msra.mxu0 0
  %580 = vmatprep.subr.bf16.mxu0 0
  %581 = vmatpush1.bf16.msra.mxu0 0
  %582 = vmatprep.subr.bf16.mxu0 0
  %583 = vmatpush1.bf16.msra.mxu0 0
  %584 = vmatprep.subr.bf16.mxu0 0
  %585 = vmatpush1.bf16.msra.mxu0 0
  %586 = vmatprep.subr.bf16.mxu0 0
  %587 = vmatpush1.bf16.msra.mxu0 0
  %588 = vmatprep.subr.bf16.mxu0 0
  %589 = vmatpush1.bf16.msra.mxu0 0
  %590 = vmatprep.mubr.bf16.mxu0 0
  %591 = vmatmul.mubr.bf16.gmra.mrb[0].mxu0 %v550
  %v592 = vpop.f32.mrb[0].mxu0
  %v593 = vadd.f32 0.0, %v592
  %v594 = vpop.f32.mrb[0].mxu0
  %v595 = vpop.f32.mrb[0].mxu0
  %v596 = vadd.f32 0.0, %v595
  %v597 = vpop.f32.mrb[0].mxu0
  %598 = vmatprep.mubr.bf16.mxu0 0
  %599 = vmatmul.mubr.bf16.gmra.mrb[0].mxu0 %v551
  %v600 = vpop.f32.mrb[0].mxu0
  %v601 = vadd.f32 0.0, %v600
  %v602 = vpop.f32.mrb[0].mxu0
  %v603 = vpop.f32.mrb[0].mxu0
  %v604 = vadd.f32 0.0, %v603
  %v605 = vpop.f32.mrb[0].mxu0
  %606 = vmatprep.mubr.bf16.mxu0 0
  %607 = vmatmul.mubr.bf16.gmra.mrb[0].mxu0 %v552
  %v608 = vpop.f32.mrb[0].mxu0
  %v609 = vadd.f32 0.0, %v608
  %v610 = vpop.f32.mrb[0].mxu0
  %v611 = vpop.f32.mrb[0].mxu0
  %v612 = vadd.f32 0.0, %v611
  %v613 = vpop.f32.mrb[0].mxu0
  %614 = vmatprep.mubr.bf16.mxu0 0
  %615 = vmatmul.mubr.bf16.gmra.mrb[0].mxu0 %v553
  %v616 = vpop.f32.mrb[0].mxu0
  %v617 = vadd.f32 0.0, %v616
  %v618 = vpop.f32.mrb[0].mxu0
  %v619 = vpop.f32.mrb[0].mxu0
  %v620 = vadd.f32 0.0, %v619
  %v621 = vpop.f32.mrb[0].mxu0
  %622 = vdwg.mxu0
  %v623 = vmul.f32 %v593, 0.25
  %v624 = vmul.f32 %v596, 0.25
  %v625 = vmul.f32 %v601, 0.25
  %v626 = vmul.f32 %v604, 0.25
  %v627 = vmul.f32 %v609, 0.25
  %v628 = vmul.f32 %v612, 0.25
  %v629 = vmul.f32 %v617, 0.25
  %v630 = vmul.f32 %v620, 0.25
  %v631 = vsub.f32 %v518, %v623
  %v632 = vsub.f32 %v519, %v624
  %v633 = vsub.f32 %v520, %v625
  %v634 = vsub.f32 %v521, %v626
  %v635 = vsub.f32 %v522, %v627
  %v636 = vsub.f32 %v523, %v628
  %v637 = vsub.f32 %v524, %v629
  %v638 = vsub.f32 %v525, %v630
  %v639 = vpack.c.bf16 %v632, %v631
  %v640 = vpack.c.bf16 %v634, %v633
  %v641 = vpack.c.bf16 %v636, %v635
  %v642 = vpack.c.bf16 %v638, %v637
  %643 = vmatprep.subr.bf16.mxu0 0
  %644 = vmatpush1.bf16.msra.mxu0 %v639
  %645 = vmatprep.subr.bf16.mxu0 0
  %646 = vmatpush1.bf16.msra.mxu0 %v640
  %647 = vmatprep.subr.bf16.mxu0 0
  %648 = vmatpush1.bf16.msra.mxu0 %v641
  %649 = vmatprep.subr.bf16.mxu0 0
  %650 = vmatpush1.bf16.msra.mxu0 %v642
  %651 = vmatprep.subr.bf16.mxu0 0
  %652 = vmatpush1.bf16.msra.mxu0 0
  %653 = vmatprep.subr.bf16.mxu0 0
  %654 = vmatpush1.bf16.msra.mxu0 0
  %655 = vmatprep.subr.bf16.mxu0 0
  %656 = vmatpush1.bf16.msra.mxu0 0
  %657 = vmatprep.subr.bf16.mxu0 0
  %658 = vmatpush1.bf16.msra.mxu0 0
  %659 = vmatprep.subr.bf16.mxu0 0
  %660 = vmatpush1.bf16.msra.mxu0 0
  %661 = vmatprep.subr.bf16.mxu0 0
  %662 = vmatpush1.bf16.msra.mxu0 0
  %663 = vmatprep.subr.bf16.mxu0 0
  %664 = vmatpush1.bf16.msra.mxu0 0
  %665 = vmatprep.subr.bf16.mxu0 0
  %666 = vmatpush1.bf16.msra.mxu0 0
  %667 = vmatprep.subr.bf16.mxu0 0
  %668 = vmatpush1.bf16.msra.mxu0 0
  %669 = vmatprep.subr.bf16.mxu0 0
  %670 = vmatpush1.bf16.msra.mxu0 0
  %671 = vmatprep.subr.bf16.mxu0 0
  %672 = vmatpush1.bf16.msra.mxu0 0
  %673 = vmatprep.subr.bf16.mxu0 0
  %674 = vmatpush1.bf16.msra.mxu0 0
  %675 = vmatprep.mubr.bf16.mxu0 0
  %676 = vmatmul.mubr.bf16.gmra.mrb[0].mxu0 %v390
  %v677 = vpop.f32.mrb[0].mxu0
  %v678 = vadd.f32 0.0, %v677
  %v679 = vpop.f32.mrb[0].mxu0
  %v680 = vpop.f32.mrb[0].mxu0
  %v681 = vadd.f32 0.0, %v680
  %v682 = vpop.f32.mrb[0].mxu0
  %683 = vmatprep.mubr.bf16.mxu0 0
  %684 = vmatmul.mubr.bf16.gmra.mrb[0].mxu0 %v393
  %v685 = vpop.f32.mrb[0].mxu0
  %v686 = vadd.f32 0.0, %v685
  %v687 = vpop.f32.mrb[0].mxu0
  %v688 = vpop.f32.mrb[0].mxu0
  %v689 = vadd.f32 0.0, %v688
  %v690 = vpop.f32.mrb[0].mxu0
  %691 = vmatprep.mubr.bf16.mxu0 0
  %692 = vmatmul.mubr.bf16.gmra.mrb[0].mxu0 %v396
  %v693 = vpop.f32.mrb[0].mxu0
  %v694 = vadd.f32 0.0, %v693
  %v695 = vpop.f32.mrb[0].mxu0
  %v696 = vpop.f32.mrb[0].mxu0
  %v697 = vadd.f32 0.0, %v696
  %v698 = vpop.f32.mrb[0].mxu0
  %699 = vmatprep.mubr.bf16.mxu0 0
  %700 = vmatmul.mubr.bf16.gmra.mrb[0].mxu0 %v399
  %v701 = vpop.f32.mrb[0].mxu0
  %v702 = vadd.f32 0.0, %v701
  %v703 = vpop.f32.mrb[0].mxu0
  %v704 = vpop.f32.mrb[0].mxu0
  %v705 = vadd.f32 0.0, %v704
  %v706 = vpop.f32.mrb[0].mxu0
  %707 = vmatprep.mubr.bf16.mxu0 0
  %708 = vmatmul.mubr.bf16.gmra.mrb[0].mxu0 %v402
  %v709 = vpop.f32.mrb[0].mxu0
  %v710 = vadd.f32 0.0, %v709
  %v711 = vpop.f32.mrb[0].mxu0
  %v712 = vpop.f32.mrb[0].mxu0
  %v713 = vadd.f32 0.0, %v712
  %v714 = vpop.f32.mrb[0].mxu0
  %715 = vmatprep.mubr.bf16.mxu0 0
  %716 = vmatmul.mubr.bf16.gmra.mrb[0].mxu0 %v405
  %v717 = vpop.f32.mrb[0].mxu0
  %v718 = vadd.f32 0.0, %v717
  %v719 = vpop.f32.mrb[0].mxu0
  %v720 = vpop.f32.mrb[0].mxu0
  %v721 = vadd.f32 0.0, %v720
  %v722 = vpop.f32.mrb[0].mxu0
  %723 = vmatprep.mubr.bf16.mxu0 0
  %724 = vmatmul.mubr.bf16.gmra.mrb[0].mxu0 %v408
  %v725 = vpop.f32.mrb[0].mxu0
  %v726 = vadd.f32 0.0, %v725
  %v727 = vpop.f32.mrb[0].mxu0
  %v728 = vpop.f32.mrb[0].mxu0
  %v729 = vadd.f32 0.0, %v728
  %v730 = vpop.f32.mrb[0].mxu0
  %731 = vmatprep.mubr.bf16.mxu0 0
  %732 = vmatmul.mubr.bf16.gmra.mrb[0].mxu0 %v411
  %v733 = vpop.f32.mrb[0].mxu0
  %v734 = vadd.f32 0.0, %v733
  %v735 = vpop.f32.mrb[0].mxu0
  %v736 = vpop.f32.mrb[0].mxu0
  %v737 = vadd.f32 0.0, %v736
  %v738 = vpop.f32.mrb[0].mxu0
  %739 = vdwg.mxu0
  %v740 = vmul.f32 %v678, 2.0
  %v741 = vmul.f32 %v681, 2.0
  %v742 = vmul.f32 %v686, 2.0
  %v743 = vmul.f32 %v689, 2.0
  %v744 = vmul.f32 %v694, 2.0
  %v745 = vmul.f32 %v697, 2.0
  %v746 = vmul.f32 %v702, 2.0
  %v747 = vmul.f32 %v705, 2.0
  %v748 = vmul.f32 %v710, 2.0
  %v749 = vmul.f32 %v713, 2.0
  %v750 = vmul.f32 %v718, 2.0
  %v751 = vmul.f32 %v721, 2.0
  %v752 = vmul.f32 %v726, 2.0
  %v753 = vmul.f32 %v729, 2.0
  %v754 = vmul.f32 %v734, 2.0
  %v755 = vmul.f32 %v737, 2.0
  %v756 = vadd.f32 %v448, %v740
  %v757 = vadd.f32 %v451, %v741
  %v758 = vadd.f32 %v456, %v742
  %v759 = vadd.f32 %v459, %v743
  %v760 = vadd.f32 %v464, %v744
  %v761 = vadd.f32 %v467, %v745
  %v762 = vadd.f32 %v472, %v746
  %v763 = vadd.f32 %v475, %v747
  %v764 = vadd.f32 %v480, %v748
  %v765 = vadd.f32 %v483, %v749
  %v766 = vadd.f32 %v488, %v750
  %v767 = vadd.f32 %v491, %v751
  %v768 = vadd.f32 %v496, %v752
  %v769 = vadd.f32 %v499, %v753
  %v770 = vadd.f32 %v504, %v754
  %v771 = vadd.f32 %v507, %v755
  %v772 = vmul.f32 %v756, %v756
  %v773 = vmul.f32 %v757, %v757
  %v774 = vmul.f32 %v758, %v758
  %v775 = vmul.f32 %v759, %v759
  %v776 = vmul.f32 %v760, %v760
  %v777 = vmul.f32 %v761, %v761
  %v778 = vmul.f32 %v762, %v762
  %v779 = vmul.f32 %v763, %v763
  %v780 = vmul.f32 %v764, %v764
  %v781 = vmul.f32 %v765, %v765
  %v782 = vmul.f32 %v766, %v766
  %v783 = vmul.f32 %v767, %v767
  %v784 = vmul.f32 %v768, %v768
  %v785 = vmul.f32 %v769, %v769
  %v786 = vmul.f32 %v770, %v770
  %v787 = vmul.f32 %v771, %v771
  %vm788 = vcmask 64512
  %v789 = vsel %vm788, %v772, 0.0
  %790 = vadd.xlane.f32.xlu0 %v789
  %v791 = vpop.xlane.xlu0 %790
  %v792 = vsel %vm788, %v773, 0.0
  %793 = vadd.xlane.f32.xlu0 %v792
  %v794 = vpop.xlane.xlu0 %793
  %v795 = vsel %vm788, %v774, 0.0
  %796 = vadd.xlane.f32.xlu0 %v795
  %v797 = vpop.xlane.xlu0 %796
  %v798 = vsel %vm788, %v775, 0.0
  %799 = vadd.xlane.f32.xlu0 %v798
  %v800 = vpop.xlane.xlu0 %799
  %v801 = vsel %vm788, %v776, 0.0
  %802 = vadd.xlane.f32.xlu0 %v801
  %v803 = vpop.xlane.xlu0 %802
  %v804 = vsel %vm788, %v777, 0.0
  %805 = vadd.xlane.f32.xlu0 %v804
  %v806 = vpop.xlane.xlu0 %805
  %v807 = vsel %vm788, %v778, 0.0
  %808 = vadd.xlane.f32.xlu0 %v807
  %v809 = vpop.xlane.xlu0 %808
  %v810 = vsel %vm788, %v779, 0.0
  %811 = vadd.xlane.f32.xlu0 %v810
  %v812 = vpop.xlane.xlu0 %811
  %v813 = vsel %vm788, %v780, 0.0
  %814 = vadd.xlane.f32.xlu0 %v813
  %v815 = vpop.xlane.xlu0 %814
  %v816 = vsel %vm788, %v781, 0.0
  %817 = vadd.xlane.f32.xlu0 %v816
  %v818 = vpop.xlane.xlu0 %817
  %v819 = vsel %vm788, %v782, 0.0
  %820 = vadd.xlane.f32.xlu0 %v819
  %v821 = vpop.xlane.xlu0 %820
  %v822 = vsel %vm788, %v783, 0.0
  %823 = vadd.xlane.f32.xlu0 %v822
  %v824 = vpop.xlane.xlu0 %823
  %v825 = vsel %vm788, %v784, 0.0
  %826 = vadd.xlane.f32.xlu0 %v825
  %v827 = vpop.xlane.xlu0 %826
  %v828 = vsel %vm788, %v785, 0.0
  %829 = vadd.xlane.f32.xlu0 %v828
  %v830 = vpop.xlane.xlu0 %829
  %v831 = vsel %vm788, %v786, 0.0
  %832 = vadd.xlane.f32.xlu0 %v831
  %v833 = vpop.xlane.xlu0 %832
  %v834 = vsel %vm788, %v787, 0.0
  %835 = vadd.xlane.f32.xlu0 %v834
  %v836 = vpop.xlane.xlu0 %835
  %v837 = vrsqrt.pop %v791
  %v838 = vrsqrt.pop %v794
  %v839 = vrsqrt.pop %v797
  %v840 = vrsqrt.pop %v800
  %v841 = vrsqrt.pop %v803
  %v842 = vrsqrt.pop %v806
  %v843 = vrsqrt.pop %v809
  %v844 = vrsqrt.pop %v812
  %v845 = vrsqrt.pop %v815
  %v846 = vrsqrt.pop %v818
  %v847 = vrsqrt.pop %v821
  %v848 = vrsqrt.pop %v824
  %v849 = vrsqrt.pop %v827
  %v850 = vrsqrt.pop %v830
  %v851 = vrsqrt.pop %v833
  %v852 = vrsqrt.pop %v836
  %v853 = vmul.f32 %v837, 3.0
  %v854 = vmul.f32 %v838, 3.0
  %v855 = vmul.f32 %v839, 3.0
  %v856 = vmul.f32 %v840, 3.0
  %v857 = vmul.f32 %v841, 3.0
  %v858 = vmul.f32 %v842, 3.0
  %v859 = vmul.f32 %v843, 3.0
  %v860 = vmul.f32 %v844, 3.0
  %v861 = vmul.f32 %v845, 3.0
  %v862 = vmul.f32 %v846, 3.0
  %v863 = vmul.f32 %v847, 3.0
  %v864 = vmul.f32 %v848, 3.0
  %v865 = vmul.f32 %v849, 3.0
  %v866 = vmul.f32 %v850, 3.0
  %v867 = vmul.f32 %v851, 3.0
  %v868 = vmul.f32 %v852, 3.0
  %v869 = vmin.f32 %v853, 1.0
  %v870 = vmin.f32 %v854, 1.0
  %v871 = vmin.f32 %v855, 1.0
  %v872 = vmin.f32 %v856, 1.0
  %v873 = vmin.f32 %v857, 1.0
  %v874 = vmin.f32 %v858, 1.0
  %v875 = vmin.f32 %v859, 1.0
  %v876 = vmin.f32 %v860, 1.0
  %v877 = vmin.f32 %v861, 1.0
  %v878 = vmin.f32 %v862, 1.0
  %v879 = vmin.f32 %v863, 1.0
  %v880 = vmin.f32 %v864, 1.0
  %v881 = vmin.f32 %v865, 1.0
  %v882 = vmin.f32 %v866, 1.0
  %v883 = vmin.f32 %v867, 1.0
  %v884 = vmin.f32 %v868, 1.0
  %v885 = vmul.f32 %v869, %v756
  %v886 = vmul.f32 %v870, %v757
  %v887 = vmul.f32 %v871, %v758
  %v888 = vmul.f32 %v872, %v759
  %v889 = vmul.f32 %v873, %v760
  %v890 = vmul.f32 %v874, %v761
  %v891 = vmul.f32 %v875, %v762
  %v892 = vmul.f32 %v876, %v763
  %v893 = vmul.f32 %v877, %v764
  %v894 = vmul.f32 %v878, %v765
  %v895 = vmul.f32 %v879, %v766
  %v896 = vmul.f32 %v880, %v767
  %v897 = vmul.f32 %v881, %v768
  %v898 = vmul.f32 %v882, %v769
  %v899 = vmul.f32 %v883, %v770
  %v900 = vmul.f32 %v884, %v771
  %v901 = vmul.f32 %v631, 0.75
  %v902 = vmul.f32 %v632, 0.75
  %v903 = vmul.f32 %v633, 0.75
  %v904 = vmul.f32 %v634, 0.75
  %v905 = vmul.f32 %v635, 0.75
  %v906 = vmul.f32 %v636, 0.75
  %v907 = vmul.f32 %v637, 0.75
  %v908 = vmul.f32 %v638, 0.75
  %v909 = vadd.f32 %v336, %v901
  %v910 = vadd.f32 %v337, %v902
  %v911 = vadd.f32 %v338, %v903
  %v912 = vadd.f32 %v339, %v904
  %v913 = vadd.f32 %v340, %v905
  %v914 = vadd.f32 %v341, %v906
  %v915 = vadd.f32 %v342, %v907
  %v916 = vadd.f32 %v343, %v908
  %v917 = vpack.c.bf16 %v886, %v885
  %v918 = vpack.c.bf16 %v888, %v887
  %v919 = vpack.c.bf16 %v890, %v889
  %v920 = vpack.c.bf16 %v892, %v891
  %v921 = vpack.c.bf16 %v894, %v893
  %v922 = vpack.c.bf16 %v896, %v895
  %v923 = vpack.c.bf16 %v898, %v897
  %v924 = vpack.c.bf16 %v900, %v899
  %925 = vmatprep.subr.bf16.mxu0 0
  %926 = vmatpush1.bf16.msra.mxu0 %v917
  %927 = vmatprep.subr.bf16.mxu0 0
  %928 = vmatpush1.bf16.msra.mxu0 %v918
  %929 = vmatprep.subr.bf16.mxu0 0
  %930 = vmatpush1.bf16.msra.mxu0 %v919
  %931 = vmatprep.subr.bf16.mxu0 0
  %932 = vmatpush1.bf16.msra.mxu0 %v920
  %933 = vmatprep.subr.bf16.mxu0 0
  %934 = vmatpush1.bf16.msra.mxu0 %v921
  %935 = vmatprep.subr.bf16.mxu0 0
  %936 = vmatpush1.bf16.msra.mxu0 %v922
  %937 = vmatprep.subr.bf16.mxu0 0
  %938 = vmatpush1.bf16.msra.mxu0 %v923
  %939 = vmatprep.subr.bf16.mxu0 0
  %940 = vmatpush1.bf16.msra.mxu0 %v924
  %941 = vmatprep.subr.bf16.mxu0 0
  %942 = vmatpush1.bf16.msra.mxu0 0
  %943 = vmatprep.subr.bf16.mxu0 0
  %944 = vmatpush1.bf16.msra.mxu0 0
  %945 = vmatprep.subr.bf16.mxu0 0
  %946 = vmatpush1.bf16.msra.mxu0 0
  %947 = vmatprep.subr.bf16.mxu0 0
  %948 = vmatpush1.bf16.msra.mxu0 0
  %949 = vmatprep.subr.bf16.mxu0 0
  %950 = vmatpush1.bf16.msra.mxu0 0
  %951 = vmatprep.subr.bf16.mxu0 0
  %952 = vmatpush1.bf16.msra.mxu0 0
  %953 = vmatprep.subr.bf16.mxu0 0
  %954 = vmatpush1.bf16.msra.mxu0 0
  %955 = vmatprep.subr.bf16.mxu0 0
  %956 = vmatpush1.bf16.msra.mxu0 0
  %957 = vmatprep.mubr.bf16.mxu0 0
  %958 = vmatmul.mubr.bf16.gmra.mrb[0].mxu0 %v550
  %v959 = vpop.f32.mrb[0].mxu0
  %v960 = vadd.f32 0.0, %v959
  %v961 = vpop.f32.mrb[0].mxu0
  %v962 = vpop.f32.mrb[0].mxu0
  %v963 = vadd.f32 0.0, %v962
  %v964 = vpop.f32.mrb[0].mxu0
  %965 = vmatprep.mubr.bf16.mxu0 0
  %966 = vmatmul.mubr.bf16.gmra.mrb[0].mxu0 %v551
  %v967 = vpop.f32.mrb[0].mxu0
  %v968 = vadd.f32 0.0, %v967
  %v969 = vpop.f32.mrb[0].mxu0
  %v970 = vpop.f32.mrb[0].mxu0
  %v971 = vadd.f32 0.0, %v970
  %v972 = vpop.f32.mrb[0].mxu0
  %973 = vmatprep.mubr.bf16.mxu0 0
  %974 = vmatmul.mubr.bf16.gmra.mrb[0].mxu0 %v552
  %v975 = vpop.f32.mrb[0].mxu0
  %v976 = vadd.f32 0.0, %v975
  %v977 = vpop.f32.mrb[0].mxu0
  %v978 = vpop.f32.mrb[0].mxu0
  %v979 = vadd.f32 0.0, %v978
  %v980 = vpop.f32.mrb[0].mxu0
  %981 = vmatprep.mubr.bf16.mxu0 0
  %982 = vmatmul.mubr.bf16.gmra.mrb[0].mxu0 %v553
  %v983 = vpop.f32.mrb[0].mxu0
  %v984 = vadd.f32 0.0, %v983
  %v985 = vpop.f32.mrb[0].mxu0
  %v986 = vpop.f32.mrb[0].mxu0
  %v987 = vadd.f32 0.0, %v986
  %v988 = vpop.f32.mrb[0].mxu0
  %989 = vdwg.mxu0
  %v990 = vmul.f32 %v960, 0.25
  %v991 = vmul.f32 %v963, 0.25
  %v992 = vmul.f32 %v968, 0.25
  %v993 = vmul.f32 %v971, 0.25
  %v994 = vmul.f32 %v976, 0.25
  %v995 = vmul.f32 %v979, 0.25
  %v996 = vmul.f32 %v984, 0.25
  %v997 = vmul.f32 %v987, 0.25
  %v998 = vsub.f32 %v909, %v990
  %v999 = vsub.f32 %v910, %v991
  %v1000 = vsub.f32 %v911, %v992
  %v1001 = vsub.f32 %v912, %v993
  %v1002 = vsub.f32 %v913, %v994
  %v1003 = vsub.f32 %v914, %v995
  %v1004 = vsub.f32 %v915, %v996
  %v1005 = vsub.f32 %v916, %v997
  %v1006 = vpack.c.bf16 %v999, %v998
  %v1007 = vpack.c.bf16 %v1001, %v1000
  %v1008 = vpack.c.bf16 %v1003, %v1002
  %v1009 = vpack.c.bf16 %v1005, %v1004
  %1010 = vmatprep.subr.bf16.mxu0 0
  %1011 = vmatpush1.bf16.msra.mxu0 %v1006
  %1012 = vmatprep.subr.bf16.mxu0 0
  %1013 = vmatpush1.bf16.msra.mxu0 %v1007
  %1014 = vmatprep.subr.bf16.mxu0 0
  %1015 = vmatpush1.bf16.msra.mxu0 %v1008
  %1016 = vmatprep.subr.bf16.mxu0 0
  %1017 = vmatpush1.bf16.msra.mxu0 %v1009
  %1018 = vmatprep.subr.bf16.mxu0 0
  %1019 = vmatpush1.bf16.msra.mxu0 0
  %1020 = vmatprep.subr.bf16.mxu0 0
  %1021 = vmatpush1.bf16.msra.mxu0 0
  %1022 = vmatprep.subr.bf16.mxu0 0
  %1023 = vmatpush1.bf16.msra.mxu0 0
  %1024 = vmatprep.subr.bf16.mxu0 0
  %1025 = vmatpush1.bf16.msra.mxu0 0
  %1026 = vmatprep.subr.bf16.mxu0 0
  %1027 = vmatpush1.bf16.msra.mxu0 0
  %1028 = vmatprep.subr.bf16.mxu0 0
  %1029 = vmatpush1.bf16.msra.mxu0 0
  %1030 = vmatprep.subr.bf16.mxu0 0
  %1031 = vmatpush1.bf16.msra.mxu0 0
  %1032 = vmatprep.subr.bf16.mxu0 0
  %1033 = vmatpush1.bf16.msra.mxu0 0
  %1034 = vmatprep.subr.bf16.mxu0 0
  %1035 = vmatpush1.bf16.msra.mxu0 0
  %1036 = vmatprep.subr.bf16.mxu0 0
  %1037 = vmatpush1.bf16.msra.mxu0 0
  %1038 = vmatprep.subr.bf16.mxu0 0
  %1039 = vmatpush1.bf16.msra.mxu0 0
  %1040 = vmatprep.subr.bf16.mxu0 0
  %1041 = vmatpush1.bf16.msra.mxu0 0
  %1042 = vmatprep.mubr.bf16.mxu0 0
  %1043 = vmatmul.mubr.bf16.gmra.mrb[0].mxu0 %v390
  %v1044 = vpop.f32.mrb[0].mxu0
  %v1045 = vadd.f32 0.0, %v1044
  %v1046 = vpop.f32.mrb[0].mxu0
  %v1047 = vpop.f32.mrb[0].mxu0
  %v1048 = vadd.f32 0.0, %v1047
  %v1049 = vpop.f32.mrb[0].mxu0
  %1050 = vmatprep.mubr.bf16.mxu0 0
  %1051 = vmatmul.mubr.bf16.gmra.mrb[0].mxu0 %v393
  %v1052 = vpop.f32.mrb[0].mxu0
  %v1053 = vadd.f32 0.0, %v1052
  %v1054 = vpop.f32.mrb[0].mxu0
  %v1055 = vpop.f32.mrb[0].mxu0
  %v1056 = vadd.f32 0.0, %v1055
  %v1057 = vpop.f32.mrb[0].mxu0
  %1058 = vmatprep.mubr.bf16.mxu0 0
  %1059 = vmatmul.mubr.bf16.gmra.mrb[0].mxu0 %v396
  %v1060 = vpop.f32.mrb[0].mxu0
  %v1061 = vadd.f32 0.0, %v1060
  %v1062 = vpop.f32.mrb[0].mxu0
  %v1063 = vpop.f32.mrb[0].mxu0
  %v1064 = vadd.f32 0.0, %v1063
  %v1065 = vpop.f32.mrb[0].mxu0
  %1066 = vmatprep.mubr.bf16.mxu0 0
  %1067 = vmatmul.mubr.bf16.gmra.mrb[0].mxu0 %v399
  %v1068 = vpop.f32.mrb[0].mxu0
  %v1069 = vadd.f32 0.0, %v1068
  %v1070 = vpop.f32.mrb[0].mxu0
  %v1071 = vpop.f32.mrb[0].mxu0
  %v1072 = vadd.f32 0.0, %v1071
  %v1073 = vpop.f32.mrb[0].mxu0
  %1074 = vmatprep.mubr.bf16.mxu0 0
  %1075 = vmatmul.mubr.bf16.gmra.mrb[0].mxu0 %v402
  %v1076 = vpop.f32.mrb[0].mxu0
  %v1077 = vadd.f32 0.0, %v1076
  %v1078 = vpop.f32.mrb[0].mxu0
  %v1079 = vpop.f32.mrb[0].mxu0
  %v1080 = vadd.f32 0.0, %v1079
  %v1081 = vpop.f32.mrb[0].mxu0
  %1082 = vmatprep.mubr.bf16.mxu0 0
  %1083 = vmatmul.mubr.bf16.gmra.mrb[0].mxu0 %v405
  %v1084 = vpop.f32.mrb[0].mxu0
  %v1085 = vadd.f32 0.0, %v1084
  %v1086 = vpop.f32.mrb[0].mxu0
  %v1087 = vpop.f32.mrb[0].mxu0
  %v1088 = vadd.f32 0.0, %v1087
  %v1089 = vpop.f32.mrb[0].mxu0
  %1090 = vmatprep.mubr.bf16.mxu0 0
  %1091 = vmatmul.mubr.bf16.gmra.mrb[0].mxu0 %v408
  %v1092 = vpop.f32.mrb[0].mxu0
  %v1093 = vadd.f32 0.0, %v1092
  %v1094 = vpop.f32.mrb[0].mxu0
  %v1095 = vpop.f32.mrb[0].mxu0
  %v1096 = vadd.f32 0.0, %v1095
  %v1097 = vpop.f32.mrb[0].mxu0
  %1098 = vmatprep.mubr.bf16.mxu0 0
  %1099 = vmatmul.mubr.bf16.gmra.mrb[0].mxu0 %v411
  %v1100 = vpop.f32.mrb[0].mxu0
  %v1101 = vadd.f32 0.0, %v1100
  %v1102 = vpop.f32.mrb[0].mxu0
  %v1103 = vpop.f32.mrb[0].mxu0
  %v1104 = vadd.f32 0.0, %v1103
  %v1105 = vpop.f32.mrb[0].mxu0
  %1106 = vdwg.mxu0
  %v1107 = vmul.f32 %v1045, 2.0
  %v1108 = vmul.f32 %v1048, 2.0
  %v1109 = vmul.f32 %v1053, 2.0
  %v1110 = vmul.f32 %v1056, 2.0
  %v1111 = vmul.f32 %v1061, 2.0
  %v1112 = vmul.f32 %v1064, 2.0
  %v1113 = vmul.f32 %v1069, 2.0
  %v1114 = vmul.f32 %v1072, 2.0
  %v1115 = vmul.f32 %v1077, 2.0
  %v1116 = vmul.f32 %v1080, 2.0
  %v1117 = vmul.f32 %v1085, 2.0
  %v1118 = vmul.f32 %v1088, 2.0
  %v1119 = vmul.f32 %v1093, 2.0
  %v1120 = vmul.f32 %v1096, 2.0
  %v1121 = vmul.f32 %v1101, 2.0
  %v1122 = vmul.f32 %v1104, 2.0
  %v1123 = vadd.f32 %v885, %v1107
  %v1124 = vadd.f32 %v886, %v1108
  %v1125 = vadd.f32 %v887, %v1109
  %v1126 = vadd.f32 %v888, %v1110
  %v1127 = vadd.f32 %v889, %v1111
  %v1128 = vadd.f32 %v890, %v1112
  %v1129 = vadd.f32 %v891, %v1113
  %v1130 = vadd.f32 %v892, %v1114
  %v1131 = vadd.f32 %v893, %v1115
  %v1132 = vadd.f32 %v894, %v1116
  %v1133 = vadd.f32 %v895, %v1117
  %v1134 = vadd.f32 %v896, %v1118
  %v1135 = vadd.f32 %v897, %v1119
  %v1136 = vadd.f32 %v898, %v1120
  %v1137 = vadd.f32 %v899, %v1121
  %v1138 = vadd.f32 %v900, %v1122
  %v1139 = vmul.f32 %v1123, %v1123
  %v1140 = vmul.f32 %v1124, %v1124
  %v1141 = vmul.f32 %v1125, %v1125
  %v1142 = vmul.f32 %v1126, %v1126
  %v1143 = vmul.f32 %v1127, %v1127
  %v1144 = vmul.f32 %v1128, %v1128
  %v1145 = vmul.f32 %v1129, %v1129
  %v1146 = vmul.f32 %v1130, %v1130
  %v1147 = vmul.f32 %v1131, %v1131
  %v1148 = vmul.f32 %v1132, %v1132
  %v1149 = vmul.f32 %v1133, %v1133
  %v1150 = vmul.f32 %v1134, %v1134
  %v1151 = vmul.f32 %v1135, %v1135
  %v1152 = vmul.f32 %v1136, %v1136
  %v1153 = vmul.f32 %v1137, %v1137
  %v1154 = vmul.f32 %v1138, %v1138
  %v1155 = vsel %vm788, %v1139, 0.0
  %1156 = vadd.xlane.f32.xlu0 %v1155
  %v1157 = vpop.xlane.xlu0 %1156
  %v1158 = vsel %vm788, %v1140, 0.0
  %1159 = vadd.xlane.f32.xlu0 %v1158
  %v1160 = vpop.xlane.xlu0 %1159
  %v1161 = vsel %vm788, %v1141, 0.0
  %1162 = vadd.xlane.f32.xlu0 %v1161
  %v1163 = vpop.xlane.xlu0 %1162
  %v1164 = vsel %vm788, %v1142, 0.0
  %1165 = vadd.xlane.f32.xlu0 %v1164
  %v1166 = vpop.xlane.xlu0 %1165
  %v1167 = vsel %vm788, %v1143, 0.0
  %1168 = vadd.xlane.f32.xlu0 %v1167
  %v1169 = vpop.xlane.xlu0 %1168
  %v1170 = vsel %vm788, %v1144, 0.0
  %1171 = vadd.xlane.f32.xlu0 %v1170
  %v1172 = vpop.xlane.xlu0 %1171
  %v1173 = vsel %vm788, %v1145, 0.0
  %1174 = vadd.xlane.f32.xlu0 %v1173
  %v1175 = vpop.xlane.xlu0 %1174
  %v1176 = vsel %vm788, %v1146, 0.0
  %1177 = vadd.xlane.f32.xlu0 %v1176
  %v1178 = vpop.xlane.xlu0 %1177
  %v1179 = vsel %vm788, %v1147, 0.0
  %1180 = vadd.xlane.f32.xlu0 %v1179
  %v1181 = vpop.xlane.xlu0 %1180
  %v1182 = vsel %vm788, %v1148, 0.0
  %1183 = vadd.xlane.f32.xlu0 %v1182
  %v1184 = vpop.xlane.xlu0 %1183
  %v1185 = vsel %vm788, %v1149, 0.0
  %1186 = vadd.xlane.f32.xlu0 %v1185
  %v1187 = vpop.xlane.xlu0 %1186
  %v1188 = vsel %vm788, %v1150, 0.0
  %1189 = vadd.xlane.f32.xlu0 %v1188
  %v1190 = vpop.xlane.xlu0 %1189
  %v1191 = vsel %vm788, %v1151, 0.0
  %1192 = vadd.xlane.f32.xlu0 %v1191
  %v1193 = vpop.xlane.xlu0 %1192
  %v1194 = vsel %vm788, %v1152, 0.0
  %1195 = vadd.xlane.f32.xlu0 %v1194
  %v1196 = vpop.xlane.xlu0 %1195
  %v1197 = vsel %vm788, %v1153, 0.0
  %1198 = vadd.xlane.f32.xlu0 %v1197
  %v1199 = vpop.xlane.xlu0 %1198
  %v1200 = vsel %vm788, %v1154, 0.0
  %1201 = vadd.xlane.f32.xlu0 %v1200
  %v1202 = vpop.xlane.xlu0 %1201
  %v1203 = vrsqrt.pop %v1157
  %v1204 = vrsqrt.pop %v1160
  %v1205 = vrsqrt.pop %v1163
  %v1206 = vrsqrt.pop %v1166
  %v1207 = vrsqrt.pop %v1169
  %v1208 = vrsqrt.pop %v1172
  %v1209 = vrsqrt.pop %v1175
  %v1210 = vrsqrt.pop %v1178
  %v1211 = vrsqrt.pop %v1181
  %v1212 = vrsqrt.pop %v1184
  %v1213 = vrsqrt.pop %v1187
  %v1214 = vrsqrt.pop %v1190
  %v1215 = vrsqrt.pop %v1193
  %v1216 = vrsqrt.pop %v1196
  %v1217 = vrsqrt.pop %v1199
  %v1218 = vrsqrt.pop %v1202
  %v1219 = vmul.f32 %v1203, 3.0
  %v1220 = vmul.f32 %v1204, 3.0
  %v1221 = vmul.f32 %v1205, 3.0
  %v1222 = vmul.f32 %v1206, 3.0
  %v1223 = vmul.f32 %v1207, 3.0
  %v1224 = vmul.f32 %v1208, 3.0
  %v1225 = vmul.f32 %v1209, 3.0
  %v1226 = vmul.f32 %v1210, 3.0
  %v1227 = vmul.f32 %v1211, 3.0
  %v1228 = vmul.f32 %v1212, 3.0
  %v1229 = vmul.f32 %v1213, 3.0
  %v1230 = vmul.f32 %v1214, 3.0
  %v1231 = vmul.f32 %v1215, 3.0
  %v1232 = vmul.f32 %v1216, 3.0
  %v1233 = vmul.f32 %v1217, 3.0
  %v1234 = vmul.f32 %v1218, 3.0
  %v1235 = vmin.f32 %v1219, 1.0
  %v1236 = vmin.f32 %v1220, 1.0
  %v1237 = vmin.f32 %v1221, 1.0
  %v1238 = vmin.f32 %v1222, 1.0
  %v1239 = vmin.f32 %v1223, 1.0
  %v1240 = vmin.f32 %v1224, 1.0
  %v1241 = vmin.f32 %v1225, 1.0
  %v1242 = vmin.f32 %v1226, 1.0
  %v1243 = vmin.f32 %v1227, 1.0
  %v1244 = vmin.f32 %v1228, 1.0
  %v1245 = vmin.f32 %v1229, 1.0
  %v1246 = vmin.f32 %v1230, 1.0
  %v1247 = vmin.f32 %v1231, 1.0
  %v1248 = vmin.f32 %v1232, 1.0
  %v1249 = vmin.f32 %v1233, 1.0
  %v1250 = vmin.f32 %v1234, 1.0
  %v1251 = vmul.f32 %v1235, %v1123
  %v1252 = vmul.f32 %v1236, %v1124
  %v1253 = vmul.f32 %v1237, %v1125
  %v1254 = vmul.f32 %v1238, %v1126
  %v1255 = vmul.f32 %v1239, %v1127
  %v1256 = vmul.f32 %v1240, %v1128
  %v1257 = vmul.f32 %v1241, %v1129
  %v1258 = vmul.f32 %v1242, %v1130
  %v1259 = vmul.f32 %v1243, %v1131
  %v1260 = vmul.f32 %v1244, %v1132
  %v1261 = vmul.f32 %v1245, %v1133
  %v1262 = vmul.f32 %v1246, %v1134
  %v1263 = vmul.f32 %v1247, %v1135
  %v1264 = vmul.f32 %v1248, %v1136
  %v1265 = vmul.f32 %v1249, %v1137
  %v1266 = vmul.f32 %v1250, %v1138
  %v1267 = vmul.f32 %v998, 0.75
  %v1268 = vmul.f32 %v999, 0.75
  %v1269 = vmul.f32 %v1000, 0.75
  %v1270 = vmul.f32 %v1001, 0.75
  %v1271 = vmul.f32 %v1002, 0.75
  %v1272 = vmul.f32 %v1003, 0.75
  %v1273 = vmul.f32 %v1004, 0.75
  %v1274 = vmul.f32 %v1005, 0.75
  %v1275 = vadd.f32 %v336, %v1267
  %v1276 = vadd.f32 %v337, %v1268
  %v1277 = vadd.f32 %v338, %v1269
  %v1278 = vadd.f32 %v339, %v1270
  %v1279 = vadd.f32 %v340, %v1271
  %v1280 = vadd.f32 %v341, %v1272
  %v1281 = vadd.f32 %v342, %v1273
  %v1282 = vadd.f32 %v343, %v1274
  %v1283 = vpack.c.bf16 %v1252, %v1251
  %v1284 = vpack.c.bf16 %v1254, %v1253
  %v1285 = vpack.c.bf16 %v1256, %v1255
  %v1286 = vpack.c.bf16 %v1258, %v1257
  %v1287 = vpack.c.bf16 %v1260, %v1259
  %v1288 = vpack.c.bf16 %v1262, %v1261
  %v1289 = vpack.c.bf16 %v1264, %v1263
  %v1290 = vpack.c.bf16 %v1266, %v1265
  %1291 = vmatprep.subr.bf16.mxu0 0
  %1292 = vmatpush1.bf16.msra.mxu0 %v1283
  %1293 = vmatprep.subr.bf16.mxu0 0
  %1294 = vmatpush1.bf16.msra.mxu0 %v1284
  %1295 = vmatprep.subr.bf16.mxu0 0
  %1296 = vmatpush1.bf16.msra.mxu0 %v1285
  %1297 = vmatprep.subr.bf16.mxu0 0
  %1298 = vmatpush1.bf16.msra.mxu0 %v1286
  %1299 = vmatprep.subr.bf16.mxu0 0
  %1300 = vmatpush1.bf16.msra.mxu0 %v1287
  %1301 = vmatprep.subr.bf16.mxu0 0
  %1302 = vmatpush1.bf16.msra.mxu0 %v1288
  %1303 = vmatprep.subr.bf16.mxu0 0
  %1304 = vmatpush1.bf16.msra.mxu0 %v1289
  %1305 = vmatprep.subr.bf16.mxu0 0
  %1306 = vmatpush1.bf16.msra.mxu0 %v1290
  %1307 = vmatprep.subr.bf16.mxu0 0
  %1308 = vmatpush1.bf16.msra.mxu0 0
  %1309 = vmatprep.subr.bf16.mxu0 0
  %1310 = vmatpush1.bf16.msra.mxu0 0
  %1311 = vmatprep.subr.bf16.mxu0 0
  %1312 = vmatpush1.bf16.msra.mxu0 0
  %1313 = vmatprep.subr.bf16.mxu0 0
  %1314 = vmatpush1.bf16.msra.mxu0 0
  %1315 = vmatprep.subr.bf16.mxu0 0
  %1316 = vmatpush1.bf16.msra.mxu0 0
  %1317 = vmatprep.subr.bf16.mxu0 0
  %1318 = vmatpush1.bf16.msra.mxu0 0
  %1319 = vmatprep.subr.bf16.mxu0 0
  %1320 = vmatpush1.bf16.msra.mxu0 0
  %1321 = vmatprep.subr.bf16.mxu0 0
  %1322 = vmatpush1.bf16.msra.mxu0 0
  %1323 = vmatprep.mubr.bf16.mxu0 0
  %1324 = vmatmul.mubr.bf16.gmra.mrb[0].mxu0 %v550
  %v1325 = vpop.f32.mrb[0].mxu0
  %v1326 = vadd.f32 0.0, %v1325
  %v1327 = vpop.f32.mrb[0].mxu0
  %v1328 = vpop.f32.mrb[0].mxu0
  %v1329 = vadd.f32 0.0, %v1328
  %v1330 = vpop.f32.mrb[0].mxu0
  %1331 = vmatprep.mubr.bf16.mxu0 0
  %1332 = vmatmul.mubr.bf16.gmra.mrb[0].mxu0 %v551
  %v1333 = vpop.f32.mrb[0].mxu0
  %v1334 = vadd.f32 0.0, %v1333
  %v1335 = vpop.f32.mrb[0].mxu0
  %v1336 = vpop.f32.mrb[0].mxu0
  %v1337 = vadd.f32 0.0, %v1336
  %v1338 = vpop.f32.mrb[0].mxu0
  %1339 = vmatprep.mubr.bf16.mxu0 0
  %1340 = vmatmul.mubr.bf16.gmra.mrb[0].mxu0 %v552
  %v1341 = vpop.f32.mrb[0].mxu0
  %v1342 = vadd.f32 0.0, %v1341
  %v1343 = vpop.f32.mrb[0].mxu0
  %v1344 = vpop.f32.mrb[0].mxu0
  %v1345 = vadd.f32 0.0, %v1344
  %v1346 = vpop.f32.mrb[0].mxu0
  %1347 = vmatprep.mubr.bf16.mxu0 0
  %1348 = vmatmul.mubr.bf16.gmra.mrb[0].mxu0 %v553
  %v1349 = vpop.f32.mrb[0].mxu0
  %v1350 = vadd.f32 0.0, %v1349
  %v1351 = vpop.f32.mrb[0].mxu0
  %v1352 = vpop.f32.mrb[0].mxu0
  %v1353 = vadd.f32 0.0, %v1352
  %v1354 = vpop.f32.mrb[0].mxu0
  %1355 = vdwg.mxu0
  %v1356 = vmul.f32 %v1326, 0.25
  %v1357 = vmul.f32 %v1329, 0.25
  %v1358 = vmul.f32 %v1334, 0.25
  %v1359 = vmul.f32 %v1337, 0.25
  %v1360 = vmul.f32 %v1342, 0.25
  %v1361 = vmul.f32 %v1345, 0.25
  %v1362 = vmul.f32 %v1350, 0.25
  %v1363 = vmul.f32 %v1353, 0.25
  %v1364 = vsub.f32 %v1275, %v1356
  %v1365 = vsub.f32 %v1276, %v1357
  %v1366 = vsub.f32 %v1277, %v1358
  %v1367 = vsub.f32 %v1278, %v1359
  %v1368 = vsub.f32 %v1279, %v1360
  %v1369 = vsub.f32 %v1280, %v1361
  %v1370 = vsub.f32 %v1281, %v1362
  %v1371 = vsub.f32 %v1282, %v1363
  %1372 = vst.msk [vmem:[%s6] sm:$0xff] %vm788, %v1364
  %1373 = vst.msk [vmem:[%s6 + $0x8] sm:$0xff] %vm788, %v1365
  %1374 = vst.msk [vmem:[%s6 + $0x10] sm:$0xff] %vm788, %v1366
  %1375 = vst.msk [vmem:[%s6 + $0x18] sm:$0xff] %vm788, %v1367
  %1376 = vst.msk [vmem:[%s6 + $0x20] sm:$0xff] %vm788, %v1368
  %1377 = vst.msk [vmem:[%s6 + $0x28] sm:$0xff] %vm788, %v1369
  %1378 = vst.msk [vmem:[%s6 + $0x30] sm:$0xff] %vm788, %v1370
  %1379 = vst.msk [vmem:[%s6 + $0x38] sm:$0xff] %vm788, %v1371
  // Predicated region
  $region26: #{elastic_gnn_forward.1} parent=0 // pred_check
    _
  $region27: #{elastic_gnn_forward.1} parent=0 // pred_check_branch
    %1381 = sbr.rel (0) target = $region29
  $region28: #{elastic_gnn_forward.1} parent=0 // pred_region
    _
  $region29: #{elastic_gnn_forward.1} parent=0 // pred_fallthru
    _
  // Predicated region
  $region30: #{elastic_gnn_forward.1} parent=0 // pred_check
    _
  $region31: #{elastic_gnn_forward.1} parent=0 // pred_check_branch
    %1383 = sbr.rel (0) target = $region33
  $region32: #{elastic_gnn_forward.1} parent=0 // pred_region
    _
  $region33: #{elastic_gnn_forward.1} parent=0 // pred_fallthru
    _

</llo_original>
